<compile_context>
chip_gen: v7x
topology: tpu7x:2x2x1
jax: 0.10.0
libtpu: 0.0.40
codegen_flags: <defaults>
</compile_context>

<pallas_src>
import functools

import jax
import jax.numpy as jnp
from jax import lax
from jax.experimental import pallas as pl
from jax.experimental.pallas import tpu as pltpu


# ----------------------------- helpers ------------------------------------ #

def _round_up(n, m):
    return (n + m - 1) // m * m


def _pick_vocab_tile(vp, max_tile=2048):
    """Largest multiple of 128 that divides vp and is <= max_tile."""
    t = max(128, (min(vp, max_tile) // 128) * 128)
    while vp % t:
        t -= 128
    return t


def _pick_batch_block(B, T, D, tv, target_rows=256, vmem_budget=40 << 20):
    """Batch elements per grid step.

    * ~target_rows MXU rows per step (use 128 on v5e, 256 on v6e/v7x),
    * at least two batch blocks when B >= 2 so the "parallel" axis can feed
      both v7x TensorCores,
    * derated so double-buffered blocks + f32 temporaries stay under budget.
    """
    bb = max(1, min(B, max(1, target_rows // max(T, 1))))
    if B >= 2:
        bb = min(bb, B // 2)
    while B % bb:
        bb -= 1

    def _ws(b):
        r = b * T
        return (2 * r * D * 2 + 2 * D * tv * 2 + 2 * r * tv * 4 + 4 * tv * 4
                + r * tv * 16)

    while bb > 1 and _ws(bb) > vmem_budget:
        bb -= 1
        while B % bb:
            bb -= 1
    return bb


def _vmem_limit_bytes(rows, D, tv, S):
    ws = (2 * rows * D * 2 + 2 * D * tv * 2 + 2 * rows * tv * 4 + 4 * tv * 4
          + rows * tv * 16 + 4 * rows * max(S, 1) * 4 + (2 << 20))
    return int(min(112 << 20, max(32 << 20, ws)))


def prepare_generator_params(proj_w, proj_b, pgen_w=None, pgen_b=None,
                             compute_dtype=jnp.bfloat16):
    """Pad/fuse projection weights once (cache and reuse across forward calls).

    Vocab is padded to a multiple of 128 lanes; padded columns get zero weight
    and a -1e30 bias so they fall out of the softmax with no in-kernel mask.
    The p_gen weight is padded to a lane-dense (D, 128) tile (gate at lane 0).
    """
    proj_w = jnp.asarray(proj_w)
    D, V = proj_w.shape
    Vp = _round_up(V, 128)
    w_p = jnp.zeros((D, Vp), compute_dtype).at[:, :V].set(
        proj_w.astype(compute_dtype))
    b_p = jnp.full((1, Vp), -1e30, jnp.float32).at[0, :V].set(
        jnp.asarray(proj_b).astype(jnp.float32))
    params = {"w": w_p, "b": b_p, "V": V, "Vp": Vp, "D": D}
    if pgen_w is not None:
        gw = jnp.zeros((D, 128), compute_dtype).at[:, 0].set(
            jnp.asarray(pgen_w).reshape(D).astype(compute_dtype))
        gb = jnp.zeros((1, 128), jnp.float32).at[0, 0].set(
            jnp.reshape(jnp.asarray(pgen_b), (-1,))[0].astype(jnp.float32))
        params["gw"] = gw
        params["gb"] = gb
    return params


# ----------------------------- kernels ------------------------------------ #

def _pg_stats_kernel(x_ref, w_ref, b_ref, gw_ref, gb_ref, attn_ref,
                     coef_ref, mrow_ref, attnw_ref, m_sc, z_sc, *, inv_temp):
    """Pass 1 (pointer_gen): online max/sum-exp over vocab tiles; at the last
    tile emit coef = alpha/Z, m, and (1-alpha)*softmax(attn/temp)."""
    v = pl.program_id(1)
    Bb, T, D = x_ref.shape
    R = Bb * T

    @pl.when(v == 0)
    def _():
        m_sc[...] = jnp.full(m_sc.shape, -jnp.inf, m_sc.dtype)
        z_sc[...] = jnp.zeros(z_sc.shape, z_sc.dtype)

    x = x_ref[...].reshape(R, D)
    s = jnp.dot(x, w_ref[...], preferred_element_type=jnp.float32) + b_ref[...]
    if inv_temp != 1.0:
        s = s * inv_temp
    m_prev = m_sc[...]
    m_new = jnp.maximum(m_prev, jnp.max(s, axis=-1, keepdims=True))
    z_sc[...] = (z_sc[...] * jnp.exp(m_prev - m_new)
                 + jnp.sum(jnp.exp(s - m_new), axis=-1, keepdims=True))
    m_sc[...] = m_new

    @pl.when(v == pl.num_programs(1) - 1)
    def _():
        gate = jnp.dot(x, gw_ref[...],
                       preferred_element_type=jnp.float32) + gb_ref[...]
        alpha = jax.nn.sigmoid(gate[:, 0:1])                    # (R, 1)
        coef_ref[...] = (alpha / z_sc[...]).reshape(Bb, T, 1)   # exact divide
        mrow_ref[...] = m_sc[...].reshape(Bb, T, 1)
        a = attn_ref[...]                                       # (Bb, T, S)
        if inv_temp != 1.0:
            a = a * inv_temp
        a = a - jnp.max(a, axis=-1, keepdims=True)
        ea = jnp.exp(a)
        attn_p = ea / jnp.sum(ea, axis=-1, keepdims=True)       # exact divide
        attnw_ref[...] = ((1.0 - alpha).reshape(Bb, T, 1)
                          * attn_p).astype(attnw_ref.dtype)


def _pg_out_kernel(x_ref, w_ref, b_ref, coef_ref, mrow_ref, attnw_ref, enc_ref,
                   out_ref, *, inv_temp, vocab_tile):
    """Pass 2 (pointer_gen): per vocab tile write
    log(coef * exp(s - m) + attn_w @ one_hot_tile)."""
    Bb, T, D = x_ref.shape
    Tv = w_ref.shape[1]
    S = attnw_ref.shape[2]
    R = Bb * T

    x = x_ref[...].reshape(R, D)
    s = jnp.dot(x, w_ref[...], preferred_element_type=jnp.float32) + b_ref[...]
    if inv_temp != 1.0:
        s = s * inv_temp
    coef = coef_ref[...].reshape(R, 1)
    m = mrow_ref[...].reshape(R, 1)
    vocab_term = (coef * jnp.exp(s - m)).reshape(Bb, T, Tv)

    # Lane-dense one-hot (vocab on lanes) + single batched NN matmul.
    v0 = pl.program_id(1) * vocab_tile
    lane = lax.broadcasted_iota(jnp.int32, (Bb, S, Tv), 2) + v0
    one_hot = (lane == enc_ref[...]).astype(attnw_ref.dtype)    # (Bb, S, Tv)
    scat = jnp.einsum("bts,bsv->btv", attnw_ref[...], one_hot,
                      preferred_element_type=jnp.float32)
    out_ref[...] = jnp.log(vocab_term + scat).astype(out_ref.dtype)


def _ls_stats_kernel(x_ref, w_ref, b_ref, mrow_ref, lse_ref, m_sc, z_sc):
    """Pass 1 (log_softmax): online max / log-sum-exp over vocab tiles."""
    v = pl.program_id(1)
    Bb, T, D = x_ref.shape
    R = Bb * T

    @pl.when(v == 0)
    def _():
        m_sc[...] = jnp.full(m_sc.shape, -jnp.inf, m_sc.dtype)
        z_sc[...] = jnp.zeros(z_sc.shape, z_sc.dtype)

    x = x_ref[...].reshape(R, D)
    s = jnp.dot(x, w_ref[...], preferred_element_type=jnp.float32) + b_ref[...]
    m_prev = m_sc[...]
    m_new = jnp.maximum(m_prev, jnp.max(s, axis=-1, keepdims=True))
    z_sc[...] = (z_sc[...] * jnp.exp(m_prev - m_new)
                 + jnp.sum(jnp.exp(s - m_new), axis=-1, keepdims=True))
    m_sc[...] = m_new

    @pl.when(v == pl.num_programs(1) - 1)
    def _():
        mrow_ref[...] = m_sc[...].reshape(Bb, T, 1)
        lse_ref[...] = jnp.log(z_sc[...]).reshape(Bb, T, 1)


def _ls_out_kernel(x_ref, w_ref, b_ref, mrow_ref, lse_ref, out_ref):
    """Pass 2 (log_softmax): write s - m - lse per vocab tile."""
    Bb, T, D = x_ref.shape
    Tv = w_ref.shape[1]
    R = Bb * T
    x = x_ref[...].reshape(R, D)
    s = jnp.dot(x, w_ref[...], preferred_element_type=jnp.float32) + b_ref[...]
    m = mrow_ref[...].reshape(R, 1)
    lse = lse_ref[...].reshape(R, 1)
    out_ref[...] = (s - m - lse).reshape(Bb, T, Tv).astype(out_ref.dtype)


# ----------------------------- wrapper ------------------------------------ #

def generator_forward(params, x, attn_dist=None, enc_batch_extend_vocab=None,
                      extra_zeros=None, temp=1.0, pointer_gen=True,
                      beam_search=False, attn_dist_db=None, *,
                      trim_output=True, out_dtype=jnp.float32,
                      target_rows=256, max_vocab_tile=2048):
    """Pallas implementation of Generator.forward.

    params: output of prepare_generator_params (cached padded/fused weights)
    x:      (B, T, D) float32
    attn_dist:              (B, T, S) float32   (pointer_gen only)
    enc_batch_extend_vocab: (B, S)    int32     (pointer_gen only)
    """
    del extra_zeros, attn_dist_db   # unused by this forward (matches reference)

    B, T, D = x.shape
    V, Vp = params["V"], params["Vp"]
    w_p, b_p = params["w"], params["b"]
    x_c = x.astype(w_p.dtype)

    Tv = _pick_vocab_tile(Vp, max_vocab_tile)
    nvt = Vp // Tv
    Bb = _pick_batch_block(B, T, D, Tv, target_rows)
    nb = B // Bb
    grid = (nb, nvt)

    if not pointer_gen:
        vlimit = _vmem_limit_bytes(Bb * T, D, Tv, 1)
        cp_red = pltpu.CompilerParams(
            dimension_semantics=("parallel", "arbitrary"),
            vmem_limit_bytes=vlimit)
        cp_par = pltpu.CompilerParams(
            dimension_semantics=("parallel", "parallel"),
            vmem_limit_bytes=vlimit)
        mrow, lse = pl.pallas_call(
            _ls_stats_kernel,
            out_shape=(jax.ShapeDtypeStruct((B, T, 1), jnp.float32),
                       jax.ShapeDtypeStruct((B, T, 1), jnp.float32)),
            grid=grid,
            in_specs=[
                pl.BlockSpec((Bb, T, D), lambda i, v: (i, 0, 0)),
                pl.BlockSpec((D, Tv), lambda i, v: (0, v)),
                pl.BlockSpec((1, Tv), lambda i, v: (0, v)),
            ],
            out_specs=(pl.BlockSpec((Bb, T, 1), lambda i, v: (i, 0, 0)),
                       pl.BlockSpec((Bb, T, 1), lambda i, v: (i, 0, 0))),
            scratch_shapes=[pltpu.VMEM((Bb * T, 1), jnp.float32),
                            pltpu.VMEM((Bb * T, 1), jnp.float32)],
            compiler_params=cp_red,
        )(x_c, w_p, b_p)
        out = pl.pallas_call(
            _ls_out_kernel,
            out_shape=jax.ShapeDtypeStruct((B, T, Vp), out_dtype),
            grid=grid,
            in_specs=[
                pl.BlockSpec((Bb, T, D), lambda i, v: (i, 0, 0)),
                pl.BlockSpec((D, Tv), lambda i, v: (0, v)),
                pl.BlockSpec((1, Tv), lambda i, v: (0, v)),
                pl.BlockSpec((Bb, T, 1), lambda i, v: (i, 0, 0)),
                pl.BlockSpec((Bb, T, 1), lambda i, v: (i, 0, 0)),
            ],
            out_specs=pl.BlockSpec((Bb, T, Tv), lambda i, v: (i, 0, v)),
            compiler_params=cp_par,
        )(x_c, w_p, b_p, mrow, lse)
        return out[:, :, :V] if trim_output else out

    # ---- pointer_gen branch ---- #
    S = attn_dist.shape[-1]
    gw, gb = params["gw"], params["gb"]
    enc = enc_batch_extend_vocab.astype(jnp.int32)
    if beam_search:
        # torch.cat([enc_batch_extend_vocab_[0].unsqueeze(0)] * B, 0)
        enc = jnp.broadcast_to(enc[0:1], enc.shape)
    enc3 = enc[:, :, None]                 # (B, S, 1): scatter ids on sublanes

    inv_temp = 1.0 / float(temp)
    vlimit = _vmem_limit_bytes(Bb * T, D, Tv, S)
    cp_red = pltpu.CompilerParams(
        dimension_semantics=("parallel", "arbitrary"), vmem_limit_bytes=vlimit)
    cp_par = pltpu.CompilerParams(
        dimension_semantics=("parallel", "parallel"), vmem_limit_bytes=vlimit)

    coef, mrow, attn_w = pl.pallas_call(
        functools.partial(_pg_stats_kernel, inv_temp=inv_temp),
        out_shape=(jax.ShapeDtypeStruct((B, T, 1), jnp.float32),
                   jax.ShapeDtypeStruct((B, T, 1), jnp.float32),
                   jax.ShapeDtypeStruct((B, T, S), jnp.bfloat16)),
        grid=grid,
        in_specs=[
            pl.BlockSpec((Bb, T, D), lambda i, v: (i, 0, 0)),   # x (bf16)
            pl.BlockSpec((D, Tv), lambda i, v: (0, v)),         # proj W tile
            pl.BlockSpec((1, Tv), lambda i, v: (0, v)),         # proj b tile
            pl.BlockSpec((D, 128), lambda i, v: (0, 0)),        # p_gen W (padded)
            pl.BlockSpec((1, 128), lambda i, v: (0, 0)),        # p_gen b (padded)
            pl.BlockSpec((Bb, T, S), lambda i, v: (i, 0, 0)),   # attn_dist
        ],
        out_specs=(pl.BlockSpec((Bb, T, 1), lambda i, v: (i, 0, 0)),
                   pl.BlockSpec((Bb, T, 1), lambda i, v: (i, 0, 0)),
                   pl.BlockSpec((Bb, T, S), lambda i, v: (i, 0, 0))),
        scratch_shapes=[pltpu.VMEM((Bb * T, 1), jnp.float32),
                        pltpu.VMEM((Bb * T, 1), jnp.float32)],
        compiler_params=cp_red,
    )(x_c, w_p, b_p, gw, gb, attn_dist.astype(jnp.float32))

    out = pl.pallas_call(
        functools.partial(_pg_out_kernel, inv_temp=inv_temp, vocab_tile=Tv),
        out_shape=jax.ShapeDtypeStruct((B, T, Vp), out_dtype),
        grid=grid,
        in_specs=[
            pl.BlockSpec((Bb, T, D), lambda i, v: (i, 0, 0)),   # x (bf16)
            pl.BlockSpec((D, Tv), lambda i, v: (0, v)),         # proj W tile
            pl.BlockSpec((1, Tv), lambda i, v: (0, v)),         # proj b tile
            pl.BlockSpec((Bb, T, 1), lambda i, v: (i, 0, 0)),   # alpha / Z
            pl.BlockSpec((Bb, T, 1), lambda i, v: (i, 0, 0)),   # row max m
            pl.BlockSpec((Bb, T, S), lambda i, v: (i, 0, 0)),   # (1-a)*softmax(attn)
            pl.BlockSpec((Bb, S, 1), lambda i, v: (i, 0, 0)),   # scatter ids
        ],
        out_specs=pl.BlockSpec((Bb, T, Tv), lambda i, v: (i, 0, v)),
        compiler_params=cp_par,
    )(x_c, w_p, b_p, coef, mrow, attn_w, enc3)
    return out[:, :, :V] if trim_output else out


# ----------------------------- reference ---------------------------------- #

def _reference_pointer_gen(x, proj_w, proj_b, pgen_w, pgen_b, attn_dist, enc,
                           temp, beam_search=False):
    if beam_search:
        enc = jnp.broadcast_to(enc[0:1], enc.shape)
    alpha = jax.nn.sigmoid(x @ pgen_w + pgen_b)                # (B, T, 1)
    logit = x @ proj_w + proj_b                                # (B, T, V)
    vocab_dist_ = alpha * jax.nn.softmax(logit / temp, axis=-1)
    attn_ = (1.0 - alpha) * jax.nn.softmax(attn_dist / temp, axis=-1)
    one_hot = jax.nn.one_hot(enc, proj_w.shape[1], dtype=jnp.float32)
    scattered = jnp.einsum("bts,bsv->btv", attn_, one_hot)
    return jnp.log(vocab_dist_ + scattered)


def _reference_log_softmax(x, proj_w, proj_b):
    return jax.nn.log_softmax(x @ proj_w + proj_b, axis=-1)


# ------------------------------- main -------------------------------------- #

if __name__ == "__main__":
    B, T, S, D, V = 2, 8, 16, 32, 50

    key = jax.random.PRNGKey(0)
    kx, ka, ke, kw, kb, kpw, kpb = jax.random.split(key, 7)

    x = jax.random.normal(kx, (B, T, D), dtype=jnp.float32)
    attn_dist = jax.random.normal(ka, (B, T, S), dtype=jnp.float32)
    enc_batch_extend_vocab = jax.random.randint(ke, (B, S), 0, V, dtype=jnp.int32)

    proj_w = 0.1 * jax.random.normal(kw, (D, V), dtype=jnp.float32)
    proj_b = 0.1 * jax.random.normal(kb, (V,), dtype=jnp.float32)
    pgen_w = 0.1 * jax.random.normal(kpw, (D, 1), dtype=jnp.float32)
    pgen_b = 0.1 * jax.random.normal(kpb, (1, 1), dtype=jnp.float32)

    # Prepare the padded / fused weights ONCE and reuse across calls.
    params = prepare_generator_params(proj_w, proj_b, pgen_w, pgen_b)

    tol = dict(atol=3e-2, rtol=3e-2)   # bf16 MXU operands

    # pointer_gen = True, temp = 1
    out_pg = jax.block_until_ready(generator_forward(
        params, x, attn_dist=attn_dist,
        enc_batch_extend_vocab=enc_batch_extend_vocab,
        temp=1.0, pointer_gen=True))
    ref_pg = _reference_pointer_gen(x, proj_w, proj_b, pgen_w, pgen_b,
                                    attn_dist, enc_batch_extend_vocab, 1.0)
    assert out_pg.shape == (B, T, V)
    assert jnp.allclose(out_pg, ref_pg, **tol), "pointer_gen (temp=1) mismatch"

    # pointer_gen = True, temp = 2, beam_search = True
    out_bs = jax.block_until_ready(generator_forward(
        params, x, attn_dist=attn_dist,
        enc_batch_extend_vocab=enc_batch_extend_vocab,
        temp=2.0, pointer_gen=True, beam_search=True))
    ref_bs = _reference_pointer_gen(x, proj_w, proj_b, pgen_w, pgen_b,
                                    attn_dist, enc_batch_extend_vocab, 2.0,
                                    beam_search=True)
    assert jnp.allclose(out_bs, ref_bs, **tol), "pointer_gen (beam) mismatch"

    # pointer_gen = False
    out_ls = jax.block_until_ready(generator_forward(params, x, pointer_gen=False))
    ref_ls = _reference_log_softmax(x, proj_w, proj_b)
    assert jnp.allclose(out_ls, ref_ls, **tol), "log_softmax mismatch"

    print("KERNEL_OK")
</pallas_src>

<mosaic_0001>
module attributes {stable_mosaic.version = 11 : i64} {
  func.func @_pg_stats_kernel(%arg0: i32, %arg1: i32, %arg2: memref<1x8x32xbf16, #tpu.memory_space<vmem>>, %arg3: memref<32x128xbf16, #tpu.memory_space<vmem>>, %arg4: memref<1x128xf32, #tpu.memory_space<vmem>>, %arg5: memref<32x128xbf16, #tpu.memory_space<vmem>>, %arg6: memref<1x128xf32, #tpu.memory_space<vmem>>, %arg7: memref<1x8x16xf32, #tpu.memory_space<vmem>>, %arg8: memref<1x8x1xf32, #tpu.memory_space<vmem>>, %arg9: memref<1x8x1xf32, #tpu.memory_space<vmem>>, %arg10: memref<1x8x16xbf16, #tpu.memory_space<vmem>>, %arg11: memref<8x1xf32, #tpu.memory_space<vmem>>, %arg12: memref<8x1xf32, #tpu.memory_space<vmem>>) attributes {dimension_semantics = [#tpu.dimension_semantics<parallel>, #tpu.dimension_semantics<arbitrary>], iteration_bounds = array<i64: 2, 1>, scalar_prefetch = 0 : i64, scratch_operands = 2 : i64, tpu.core_type = #tpu.core_type<tc>, window_params = [{transform_indices = @transform_0, window_bounds = array<i64: 1, 8, 32>}, {transform_indices = @transform_1, window_bounds = array<i64: 32, 128>}, {transform_indices = @transform_2, window_bounds = array<i64: 1, 128>}, {pipeline_mode = #tpu.pipeline_mode<synchronous>, transform_indices = @transform_3, window_bounds = array<i64: 32, 128>}, {pipeline_mode = #tpu.pipeline_mode<synchronous>, transform_indices = @transform_4, window_bounds = array<i64: 1, 128>}, {transform_indices = @transform_5, window_bounds = array<i64: 1, 8, 16>}, {transform_indices = @transform_6, window_bounds = array<i64: 1, 8, 1>}, {transform_indices = @transform_7, window_bounds = array<i64: 1, 8, 1>}, {transform_indices = @transform_8, window_bounds = array<i64: 1, 8, 16>}]} {
    %c0_i32 = arith.constant 0 : i32
    %0 = arith.cmpi eq, %arg1, %c0_i32 : i32
    %1 = arith.extui %0 : i1 to i32
    %c0_i32_0 = arith.constant 0 : i32
    %2 = arith.cmpi ne, %1, %c0_i32_0 : i32
    scf.if %2 {
      %cst_19 = arith.constant 0xFF800000 : f32
      %29 = vector.broadcast %cst_19 : f32 to vector<8x1xf32>
      %c0_20 = arith.constant 0 : index
      %c0_21 = arith.constant 0 : index
      %30 = vector.load %arg11[%c0_20, %c0_21] : memref<8x1xf32, #tpu.memory_space<vmem>>, vector<8x1xf32>
      tpu.vector_store %arg11[%c0_20, %c0_21], %29 {strides = array<i32>} : memref<8x1xf32, #tpu.memory_space<vmem>>, vector<8x1xf32>,
      %cst_22 = arith.constant 0.000000e+00 : f32
      %31 = vector.broadcast %cst_22 : f32 to vector<8x1xf32>
      %c0_23 = arith.constant 0 : index
      %c0_24 = arith.constant 0 : index
      %32 = vector.load %arg12[%c0_23, %c0_24] : memref<8x1xf32, #tpu.memory_space<vmem>>, vector<8x1xf32>
      tpu.vector_store %arg12[%c0_23, %c0_24], %31 {strides = array<i32>} : memref<8x1xf32, #tpu.memory_space<vmem>>, vector<8x1xf32>,
    } else {
    }
    %c0 = arith.constant 0 : index
    %c0_1 = arith.constant 0 : index
    %c0_2 = arith.constant 0 : index
    %3 = vector.load %arg2[%c0, %c0_1, %c0_2] : memref<1x8x32xbf16, #tpu.memory_space<vmem>>, vector<1x8x32xbf16>
    %4 = vector.shape_cast %3 : vector<1x8x32xbf16> to vector<8x32xbf16>
    %c0_3 = arith.constant 0 : index
    %c0_4 = arith.constant 0 : index
    %5 = vector.load %arg3[%c0_3, %c0_4] : memref<32x128xbf16, #tpu.memory_space<vmem>>, vector<32x128xbf16>
    %cst = arith.constant dense<0.000000e+00> : vector<8x128xf32>
    %6 = tpu.matmul %4, %5, %cst {dimension_numbers = #tpu.dot_dimension_numbers<[1], [0], [0], [1], [0, 0, 1, 1], [], []>} : vector<8x32xbf16>, vector<32x128xbf16>, vector<8x128xf32> -> vector<8x128xf32>
    %c0_5 = arith.constant 0 : index
    %c0_6 = arith.constant 0 : index
    %7 = vector.load %arg4[%c0_5, %c0_6] : memref<1x128xf32, #tpu.memory_space<vmem>>, vector<1x128xf32>
    %8 = vector.broadcast %7 : vector<1x128xf32> to vector<8x128xf32>
    %9 = arith.addf %6, %8 : vector<8x128xf32>
    %c0_7 = arith.constant 0 : index
    %c0_8 = arith.constant 0 : index
    %10 = vector.load %arg11[%c0_7, %c0_8] : memref<8x1xf32, #tpu.memory_space<vmem>>, vector<8x1xf32>
    %cst_9 = arith.constant dense<0xFF800000> : vector<8xf32>
    %11 = vector.multi_reduction <maximumf>, %9, %cst_9 [1] : vector<8x128xf32> to vector<8xf32>
    %12 = vector.shape_cast %11 : vector<8xf32> to vector<8x1xf32>
    %13 = arith.maximumf %10, %12 : vector<8x1xf32>
    %c0_10 = arith.constant 0 : index
    %c0_11 = arith.constant 0 : index
    %14 = vector.load %arg12[%c0_10, %c0_11] : memref<8x1xf32, #tpu.memory_space<vmem>>, vector<8x1xf32>
    %15 = arith.subf %10, %13 : vector<8x1xf32>
    %16 = math.exp %15 : vector<8x1xf32>
    %17 = arith.mulf %14, %16 : vector<8x1xf32>
    %18 = vector.broadcast %13 : vector<8x1xf32> to vector<8x128xf32>
    %19 = arith.subf %9, %18 : vector<8x128xf32>
    %20 = math.exp %19 : vector<8x128xf32>
    %cst_12 = arith.constant dense<0.000000e+00> : vector<8xf32>
    %21 = vector.multi_reduction <add>, %20, %cst_12 [1] : vector<8x128xf32> to vector<8xf32>
    %22 = vector.shape_cast %21 : vector<8xf32> to vector<8x1xf32>
    %23 = arith.addf %17, %22 : vector<8x1xf32>
    %c0_13 = arith.constant 0 : index
    %c0_14 = arith.constant 0 : index
    %24 = vector.load %arg12[%c0_13, %c0_14] : memref<8x1xf32, #tpu.memory_space<vmem>>, vector<8x1xf32>
    tpu.vector_store %arg12[%c0_13, %c0_14], %23 {strides = array<i32>} : memref<8x1xf32, #tpu.memory_space<vmem>>, vector<8x1xf32>,
    %c0_15 = arith.constant 0 : index
    %c0_16 = arith.constant 0 : index
    %25 = vector.load %arg11[%c0_15, %c0_16] : memref<8x1xf32, #tpu.memory_space<vmem>>, vector<8x1xf32>
    tpu.vector_store %arg11[%c0_15, %c0_16], %13 {strides = array<i32>} : memref<8x1xf32, #tpu.memory_space<vmem>>, vector<8x1xf32>,
    %c0_i32_17 = arith.constant 0 : i32
    %26 = arith.cmpi eq, %arg1, %c0_i32_17 : i32
    %27 = arith.extui %26 : i1 to i32
    %c0_i32_18 = arith.constant 0 : i32
    %28 = arith.cmpi ne, %27, %c0_i32_18 : i32
    scf.if %28 {
      %c0_19 = arith.constant 0 : index
      %c0_20 = arith.constant 0 : index
      %29 = vector.load %arg5[%c0_19, %c0_20] : memref<32x128xbf16, #tpu.memory_space<vmem>>, vector<32x128xbf16>
      %cst_21 = arith.constant dense<0.000000e+00> : vector<8x128xf32>
      %30 = tpu.matmul %4, %29, %cst_21 {dimension_numbers = #tpu.dot_dimension_numbers<[1], [0], [0], [1], [0, 0, 1, 1], [], []>} : vector<8x32xbf16>, vector<32x128xbf16>, vector<8x128xf32> -> vector<8x128xf32>
      %c0_22 = arith.constant 0 : index
      %c0_23 = arith.constant 0 : index
      %31 = vector.load %arg6[%c0_22, %c0_23] : memref<1x128xf32, #tpu.memory_space<vmem>>, vector<1x128xf32>
      %32 = vector.broadcast %31 : vector<1x128xf32> to vector<8x128xf32>
      %33 = arith.addf %30, %32 : vector<8x128xf32>
      %34 = vector.extract_strided_slice %33 {offsets = [0, 0], sizes = [8, 1], strides = [1, 1]} : vector<8x128xf32> to vector<8x1xf32>
      %35 = arith.negf %34 : vector<8x1xf32>
      %36 = math.exp %35 : vector<8x1xf32>
      %cst_24 = arith.constant 1.000000e+00 : f32
      %37 = vector.broadcast %cst_24 : f32 to vector<8x1xf32>
      %38 = arith.addf %37, %36 : vector<8x1xf32>
      %39 = arith.divf %37, %38 : vector<8x1xf32>
      %c0_25 = arith.constant 0 : index
      %c0_26 = arith.constant 0 : index
      %40 = vector.load %arg12[%c0_25, %c0_26] : memref<8x1xf32, #tpu.memory_space<vmem>>, vector<8x1xf32>
      %41 = arith.divf %39, %40 : vector<8x1xf32>
      %42 = vector.shape_cast %41 : vector<8x1xf32> to vector<1x8x1xf32>
      %c0_27 = arith.constant 0 : index
      %c0_28 = arith.constant 0 : index
      %c0_29 = arith.constant 0 : index
      %43 = vector.load %arg8[%c0_27, %c0_28, %c0_29] : memref<1x8x1xf32, #tpu.memory_space<vmem>>, vector<1x8x1xf32>
      tpu.vector_store %arg8[%c0_27, %c0_28, %c0_29], %42 {strides = array<i32>} : memref<1x8x1xf32, #tpu.memory_space<vmem>>, vector<1x8x1xf32>,
      %c0_30 = arith.constant 0 : index
      %c0_31 = arith.constant 0 : index
      %44 = vector.load %arg11[%c0_30, %c0_31] : memref<8x1xf32, #tpu.memory_space<vmem>>, vector<8x1xf32>
      %45 = vector.shape_cast %44 : vector<8x1xf32> to vector<1x8x1xf32>
      %c0_32 = arith.constant 0 : index
      %c0_33 = arith.constant 0 : index
      %c0_34 = arith.constant 0 : index
      %46 = vector.load %arg9[%c0_32, %c0_33, %c0_34] : memref<1x8x1xf32, #tpu.memory_space<vmem>>, vector<1x8x1xf32>
      tpu.vector_store %arg9[%c0_32, %c0_33, %c0_34], %45 {strides = array<i32>} : memref<1x8x1xf32, #tpu.memory_space<vmem>>, vector<1x8x1xf32>,
      %c0_35 = arith.constant 0 : index
      %c0_36 = arith.constant 0 : index
      %c0_37 = arith.constant 0 : index
      %47 = vector.load %arg7[%c0_35, %c0_36, %c0_37] : memref<1x8x16xf32, #tpu.memory_space<vmem>>, vector<1x8x16xf32>
      %cst_38 = arith.constant dense<0xFF800000> : vector<1x8xf32>
      %48 = vector.multi_reduction <maximumf>, %47, %cst_38 [2] : vector<1x8x16xf32> to vector<1x8xf32>
      %49 = vector.shape_cast %48 : vector<1x8xf32> to vector<1x8x1xf32>
      %50 = vector.broadcast %49 : vector<1x8x1xf32> to vector<1x8x16xf32>
      %51 = arith.subf %47, %50 : vector<1x8x16xf32>
      %52 = math.exp %51 : vector<1x8x16xf32>
      %cst_39 = arith.constant dense<0.000000e+00> : vector<1x8xf32>
      %53 = vector.multi_reduction <add>, %52, %cst_39 [2] : vector<1x8x16xf32> to vector<1x8xf32>
      %54 = vector.shape_cast %53 : vector<1x8xf32> to vector<1x8x1xf32>
      %55 = vector.broadcast %54 : vector<1x8x1xf32> to vector<1x8x16xf32>
      %56 = arith.divf %52, %55 : vector<1x8x16xf32>
      %cst_40 = arith.constant 1.000000e+00 : f32
      %57 = vector.broadcast %cst_40 : f32 to vector<8x1xf32>
      %58 = arith.subf %57, %39 : vector<8x1xf32>
      %59 = vector.shape_cast %58 : vector<8x1xf32> to vector<1x8x1xf32>
      %60 = vector.broadcast %59 : vector<1x8x1xf32> to vector<1x8x16xf32>
      %61 = arith.mulf %60, %56 : vector<1x8x16xf32>
      %62 = arith.truncf %61 : vector<1x8x16xf32> to vector<1x8x16xbf16>
      %c0_41 = arith.constant 0 : index
      %c0_42 = arith.constant 0 : index
      %c0_43 = arith.constant 0 : index
      %63 = vector.load %arg10[%c0_41, %c0_42, %c0_43] : memref<1x8x16xbf16, #tpu.memory_space<vmem>>, vector<1x8x16xbf16>
      tpu.vector_store %arg10[%c0_41, %c0_42, %c0_43], %62 {strides = array<i32>} : memref<1x8x16xbf16, #tpu.memory_space<vmem>>, vector<1x8x16xbf16>,
    } else {
    }
    return
  }
  func.func @transform_0(%arg0: i32, %arg1: i32) -> (i32, i32, i32) {
    %c0_i32 = arith.constant 0 : i32
    %c0_i32_0 = arith.constant 0 : i32
    %c0_i32_1 = arith.constant 0 : i32
    return %arg0, %c0_i32, %c0_i32_0 : i32, i32, i32
  }
  func.func @transform_1(%arg0: i32, %arg1: i32) -> (i32, i32) {
    %c0_i32 = arith.constant 0 : i32
    %c0_i32_0 = arith.constant 0 : i32
    return %c0_i32, %arg1 : i32, i32
  }
  func.func @transform_2(%arg0: i32, %arg1: i32) -> (i32, i32) {
    %c0_i32 = arith.constant 0 : i32
    %c0_i32_0 = arith.constant 0 : i32
    return %c0_i32, %arg1 : i32, i32
  }
  func.func @transform_3(%arg0: i32, %arg1: i32) -> (i32, i32) {
    %c0_i32 = arith.constant 0 : i32
    %c0_i32_0 = arith.constant 0 : i32
    %c0_i32_1 = arith.constant 0 : i32
    return %c0_i32, %c0_i32_0 : i32, i32
  }
  func.func @transform_4(%arg0: i32, %arg1: i32) -> (i32, i32) {
    %c0_i32 = arith.constant 0 : i32
    %c0_i32_0 = arith.constant 0 : i32
    %c0_i32_1 = arith.constant 0 : i32
    return %c0_i32, %c0_i32_0 : i32, i32
  }
  func.func @transform_5(%arg0: i32, %arg1: i32) -> (i32, i32, i32) {
    %c0_i32 = arith.constant 0 : i32
    %c0_i32_0 = arith.constant 0 : i32
    %c0_i32_1 = arith.constant 0 : i32
    return %arg0, %c0_i32, %c0_i32_0 : i32, i32, i32
  }
  func.func @transform_6(%arg0: i32, %arg1: i32) -> (i32, i32, i32) {
    %c0_i32 = arith.constant 0 : i32
    %c0_i32_0 = arith.constant 0 : i32
    %c0_i32_1 = arith.constant 0 : i32
    return %arg0, %c0_i32, %c0_i32_0 : i32, i32, i32
  }
  func.func @transform_7(%arg0: i32, %arg1: i32) -> (i32, i32, i32) {
    %c0_i32 = arith.constant 0 : i32
    %c0_i32_0 = arith.constant 0 : i32
    %c0_i32_1 = arith.constant 0 : i32
    return %arg0, %c0_i32, %c0_i32_0 : i32, i32, i32
  }
  func.func @transform_8(%arg0: i32, %arg1: i32) -> (i32, i32, i32) {
    %c0_i32 = arith.constant 0 : i32
    %c0_i32_0 = arith.constant 0 : i32
    %c0_i32_1 = arith.constant 0 : i32
    return %arg0, %c0_i32, %c0_i32_0 : i32, i32, i32
  }
}

</mosaic_0001>

<llo_original>
// kernel: tpu_custom_call.1
$region0: #{tpu_custom_call.1}
  #allocation0 [shape = 'u32[]', space=smem, size = 0x4, offset = 0x4, fixed_abs, tag = 'smem constant byte address 0x4 - core index']
  #allocation1 [shape = 'u32[144,128]{1,0:T(1,128)}', space=vmem, size = 0x12000, scoped, tag = 'internal scratch']
  #allocation2 [shape = 'f32[8,1]{1,0:T(8,128)}', space=vmem, size = 0x1000, scoped, tag = 'scratch operand']
  #allocation3 [shape = 'f32[8,1]{1,0:T(8,128)}', space=vmem, size = 0x1000, scoped, tag = 'scratch operand']
  %s0 = inlined_call_operand.hbm [shape: bf16[2,8,32], index: 0, kind: input, shape index: {}]
  %s1 = inlined_call_operand.hbm [shape: bf16[32,128], index: 1, kind: input, shape index: {}]
  %s2 = inlined_call_operand.vmem [shape: f32[1,128], index: 2, kind: input, shape index: {}]
  %s3 = inlined_call_operand.hbm [shape: bf16[32,128], index: 3, kind: input, shape index: {}]
  %s4 = inlined_call_operand.vmem [shape: f32[1,128], index: 4, kind: input, shape index: {}]
  %s5 = inlined_call_operand.vmem [shape: f32[2,8,16], index: 5, kind: input, shape index: {}]
  %s6 = inlined_call_operand.vmem [shape: f32[2,8,1], index: 6, kind: output, shape index: {0}]
  %s7 = inlined_call_operand.vmem [shape: f32[2,8,1], index: 7, kind: output, shape index: {1}]
  %s8 = inlined_call_operand.hbm [shape: bf16[2,8,16], index: 8, kind: output, shape index: {2}]
  %9 = xla_tuple %s6, %s7, %s8
  %s10 = sld [smem:[#allocation0]]
  $region93: #{tpu_custom_call.1} parent=0
    _
  %s12 = ssub.s32 1, %s10
  %s13 = scalar_select 0, %s12, %s10
  $region1: #{tpu_custom_call.1} parent=0
    #allocation4 [shape = 'u8[4096]{0}', space=vmem, size = 0x1000, scoped, tag = 'input window, operand 0']
    #allocation5 [shape = 's32[2]{0}', space=sflag, size = 0x8, scoped, tag = 'scoped memory for tpu_custom_call.1']
    #allocation6 [shape = 's32[2]{0}', space=sflag, size = 0x8, scoped, tag = 'scoped memory for tpu_custom_call.1']
    #allocation7 [shape = 'u8[8192]{0}', space=vmem, size = 0x2000, scoped, tag = 'input window, operand 1, single buffered']
    #allocation8 [shape = 's32[1]{0}', space=sflag, size = 0x4, scoped, tag = 'scoped memory for tpu_custom_call.1']
    #allocation9 [shape = 'u8[8192]{0}', space=vmem, size = 0x2000, scoped, tag = 'input window, operand 3, single buffered']
    #allocation10 [shape = 'u8[4096]{0}', space=vmem, size = 0x1000, scoped, tag = 'output window, operand 2']
    %14 = vsyncpa [#allocation5], 0
    %s15 = scalar_lea.sflag [#allocation5], 1
    %16 = vsyncpa %s15, 0
    %17 = vsyncpa [#allocation8], 0
    %18 = vsyncpa [#allocation6], 0
    %s19 = scalar_lea.sflag [#allocation6], 1
    %20 = vsyncpa %s19, 0
    loop: start=0, step=1, limit=4
    $region2: #{tpu_custom_call.1} parent=1 // loop_pre_header
      _
    $region3: #{tpu_custom_call.1} parent=1 // loop_header
      %s22 = sphi 0, %s26
      %p23 = scmp.ge.s32.totalorder %s22, 4
      %s29 = sphi 0, %s41
      %s30 = sphi 0, %s37
      %s31 = sphi 0, %s29
      %s32 = sphi 0, %s30
      %s33 = sphi 0, %s31
      %s34 = sphi 0, %s32
      %s44 = sphi 0, %s46
      %s47 = sphi 0, %s44
      %s48 = sphi 0, %s47
      %s64 = sphi 0, %s48
      %s70 = sphi 0, %s72
      %s73 = sphi 0, %s70
      %s74 = sphi 0, %s73
      %s90 = sphi 0, %s74
      %s96 = sphi 0, %s98
      %s99 = sphi 0, %s96
      %s100 = sphi 0, %s99
      %s116 = sphi 0, %s100
      %s120 = sphi 0, %s120
      %s122 = sphi 0, %s120
      %s123 = sphi 0, %s122
      %s137 = sphi 0, %s123
      %s141 = sphi 0, %s141
      %s143 = sphi 0, %s141
      %s144 = sphi 0, %s143
      %s158 = sphi 0, %s144
      %s164 = sphi 0, %s166
      %s167 = sphi 0, %s164
      %s168 = sphi 0, %s167
      %s184 = sphi 0, %s168
      %s190 = sphi 0, %s192
      %s193 = sphi 0, %s190
      %s194 = sphi 0, %s193
      %s210 = sphi 0, %s194
      %s216 = sphi 0, %s218
      %s219 = sphi 0, %s216
      %s220 = sphi 0, %s219
      %s236 = sphi 0, %s220
      %s242 = sphi 0, %s244
      %s245 = sphi 0, %s242
      %s246 = sphi 0, %s245
      %s262 = sphi 0, %s246
    $region4: #{tpu_custom_call.1} parent=1 // loop_header_branch
      %25 = sbr.rel (%p23) target = $region8
    $region5: #{tpu_custom_call.1} parent=1 // loop_body
      %s27 = ssub.s32 %s22, 1
      %s28 = ssub.s32 %s22, 2
      %s35 = sadd.s32 1, %s30
      %p36 = scmp.ge.s32.totalorder %s35, 1
      %s37 = scalar_select %p36, 0, %s35
      %s38 = sadd.s32 1, %s29
      %s39 = scalar_select %p36, %s38, %s29
      %p40 = scmp.ge.s32.totalorder %s39, 2
      %s41 = scalar_select %p40, 0, %s39
      %s42 = ssub.s32 %s29, %s41
      %p43 = scmp.eq.s32.totalorder %s42, 0
      %s45 = sadd.s32 %s44, 1
      %s46 = scalar_select %p43, %s44, %s45
      %p49 = pneg %p43
      %p50 = scmp.eq.s32.totalorder %s22, 1
      %p51 = por %p49, %p50
      %p52 = scmp.ne.s32.totalorder %s44, %s47
      %p53 = scmp.eq.s32.totalorder %s22, 0
      %p54 = por %p52, %p53
      %p55 = scmp.ne.s32.totalorder %s44, %s47
      %p56 = scmp.eq.s32.totalorder %s27, 1
      %p57 = por %p55, %p56
      %p58 = scmp.ne.s32.totalorder %s47, %s48
      %p59 = scmp.eq.s32.totalorder %s27, 0
      %p60 = por %p58, %p59
      %p61 = scmp.ne.s32.totalorder %s47, %s48
      %p62 = scmp.eq.s32.totalorder %s28, 1
      %p63 = por %p61, %p62
      %p65 = scmp.ne.s32.totalorder %s48, %s64
      %p66 = scmp.eq.s32.totalorder %s28, 0
      %p67 = por %p65, %p66
      %s68 = ssub.s32 %s30, %s37
      %p69 = scmp.eq.s32.totalorder %s68, 0
      %s71 = sadd.s32 %s70, 1
      %s72 = scalar_select %p69, %s70, %s71
      %p75 = pneg %p69
      %p76 = scmp.eq.s32.totalorder %s22, 1
      %p77 = por %p75, %p76
      %p78 = scmp.ne.s32.totalorder %s70, %s73
      %p79 = scmp.eq.s32.totalorder %s22, 0
      %p80 = por %p78, %p79
      %p81 = scmp.ne.s32.totalorder %s70, %s73
      %p82 = scmp.eq.s32.totalorder %s27, 1
      %p83 = por %p81, %p82
      %p84 = scmp.ne.s32.totalorder %s73, %s74
      %p85 = scmp.eq.s32.totalorder %s27, 0
      %p86 = por %p84, %p85
      %p87 = scmp.ne.s32.totalorder %s73, %s74
      %p88 = scmp.eq.s32.totalorder %s28, 1
      %p89 = por %p87, %p88
      %p91 = scmp.ne.s32.totalorder %s74, %s90
      %p92 = scmp.eq.s32.totalorder %s28, 0
      %p93 = por %p91, %p92
      %s94 = ssub.s32 %s30, %s37
      %p95 = scmp.eq.s32.totalorder %s94, 0
      %s97 = sadd.s32 %s96, 1
      %s98 = scalar_select %p95, %s96, %s97
      %p101 = pneg %p95
      %p102 = scmp.eq.s32.totalorder %s22, 1
      %p103 = por %p101, %p102
      %p104 = scmp.ne.s32.totalorder %s96, %s99
      %p105 = scmp.eq.s32.totalorder %s22, 0
      %p106 = por %p104, %p105
      %p107 = scmp.ne.s32.totalorder %s96, %s99
      %p108 = scmp.eq.s32.totalorder %s27, 1
      %p109 = por %p107, %p108
      %p110 = scmp.ne.s32.totalorder %s99, %s100
      %p111 = scmp.eq.s32.totalorder %s27, 0
      %p112 = por %p110, %p111
      %p113 = scmp.ne.s32.totalorder %s99, %s100
      %p114 = scmp.eq.s32.totalorder %s28, 1
      %p115 = por %p113, %p114
      %p117 = scmp.ne.s32.totalorder %s100, %s116
      %p118 = scmp.eq.s32.totalorder %s28, 0
      %p119 = por %p117, %p118
      %s121 = sadd.s32 %s120, 1
      %p124 = scmp.eq.s32.totalorder %s22, 1
      %p125 = scmp.ne.s32.totalorder %s120, %s122
      %p126 = scmp.eq.s32.totalorder %s22, 0
      %p127 = por %p125, %p126
      %p128 = scmp.ne.s32.totalorder %s120, %s122
      %p129 = scmp.eq.s32.totalorder %s27, 1
      %p130 = por %p128, %p129
      %p131 = scmp.ne.s32.totalorder %s122, %s123
      %p132 = scmp.eq.s32.totalorder %s27, 0
      %p133 = por %p131, %p132
      %p134 = scmp.ne.s32.totalorder %s122, %s123
      %p135 = scmp.eq.s32.totalorder %s28, 1
      %p136 = por %p134, %p135
      %p138 = scmp.ne.s32.totalorder %s123, %s137
      %p139 = scmp.eq.s32.totalorder %s28, 0
      %p140 = por %p138, %p139
      %s142 = sadd.s32 %s141, 1
      %p145 = scmp.eq.s32.totalorder %s22, 1
      %p146 = scmp.ne.s32.totalorder %s141, %s143
      %p147 = scmp.eq.s32.totalorder %s22, 0
      %p148 = por %p146, %p147
      %p149 = scmp.ne.s32.totalorder %s141, %s143
      %p150 = scmp.eq.s32.totalorder %s27, 1
      %p151 = por %p149, %p150
      %p152 = scmp.ne.s32.totalorder %s143, %s144
      %p153 = scmp.eq.s32.totalorder %s27, 0
      %p154 = por %p152, %p153
      %p155 = scmp.ne.s32.totalorder %s143, %s144
      %p156 = scmp.eq.s32.totalorder %s28, 1
      %p157 = por %p155, %p156
      %p159 = scmp.ne.s32.totalorder %s144, %s158
      %p160 = scmp.eq.s32.totalorder %s28, 0
      %p161 = por %p159, %p160
      %s162 = ssub.s32 %s29, %s41
      %p163 = scmp.eq.s32.totalorder %s162, 0
      %s165 = sadd.s32 %s164, 1
      %s166 = scalar_select %p163, %s164, %s165
      %p169 = pneg %p163
      %p170 = scmp.eq.s32.totalorder %s22, 1
      %p171 = por %p169, %p170
      %p172 = scmp.ne.s32.totalorder %s164, %s167
      %p173 = scmp.eq.s32.totalorder %s22, 0
      %p174 = por %p172, %p173
      %p175 = scmp.ne.s32.totalorder %s164, %s167
      %p176 = scmp.eq.s32.totalorder %s27, 1
      %p177 = por %p175, %p176
      %p178 = scmp.ne.s32.totalorder %s167, %s168
      %p179 = scmp.eq.s32.totalorder %s27, 0
      %p180 = por %p178, %p179
      %p181 = scmp.ne.s32.totalorder %s167, %s168
      %p182 = scmp.eq.s32.totalorder %s28, 1
      %p183 = por %p181, %p182
      %p185 = scmp.ne.s32.totalorder %s168, %s184
      %p186 = scmp.eq.s32.totalorder %s28, 0
      %p187 = por %p185, %p186
      %s188 = ssub.s32 %s29, %s41
      %p189 = scmp.eq.s32.totalorder %s188, 0
      %s191 = sadd.s32 %s190, 1
      %s192 = scalar_select %p189, %s190, %s191
      %p195 = pneg %p189
      %p196 = scmp.eq.s32.totalorder %s22, 1
      %p197 = por %p195, %p196
      %p198 = scmp.ne.s32.totalorder %s190, %s193
      %p199 = scmp.eq.s32.totalorder %s22, 0
      %p200 = por %p198, %p199
      %p201 = scmp.ne.s32.totalorder %s190, %s193
      %p202 = scmp.eq.s32.totalorder %s27, 1
      %p203 = por %p201, %p202
      %p204 = scmp.ne.s32.totalorder %s193, %s194
      %p205 = scmp.eq.s32.totalorder %s27, 0
      %p206 = por %p204, %p205
      %p207 = scmp.ne.s32.totalorder %s193, %s194
      %p208 = scmp.eq.s32.totalorder %s28, 1
      %p209 = por %p207, %p208
      %p211 = scmp.ne.s32.totalorder %s194, %s210
      %p212 = scmp.eq.s32.totalorder %s28, 0
      %p213 = por %p211, %p212
      %s214 = ssub.s32 %s29, %s41
      %p215 = scmp.eq.s32.totalorder %s214, 0
      %s217 = sadd.s32 %s216, 1
      %s218 = scalar_select %p215, %s216, %s217
      %p221 = pneg %p215
      %p222 = scmp.eq.s32.totalorder %s22, 1
      %p223 = por %p221, %p222
      %p224 = scmp.ne.s32.totalorder %s216, %s219
      %p225 = scmp.eq.s32.totalorder %s22, 0
      %p226 = por %p224, %p225
      %p227 = scmp.ne.s32.totalorder %s216, %s219
      %p228 = scmp.eq.s32.totalorder %s27, 1
      %p229 = por %p227, %p228
      %p230 = scmp.ne.s32.totalorder %s219, %s220
      %p231 = scmp.eq.s32.totalorder %s27, 0
      %p232 = por %p230, %p231
      %p233 = scmp.ne.s32.totalorder %s219, %s220
      %p234 = scmp.eq.s32.totalorder %s28, 1
      %p235 = por %p233, %p234
      %p237 = scmp.ne.s32.totalorder %s220, %s236
      %p238 = scmp.eq.s32.totalorder %s28, 0
      %p239 = por %p237, %p238
      %s240 = ssub.s32 %s29, %s41
      %p241 = scmp.eq.s32.totalorder %s240, 0
      %s243 = sadd.s32 %s242, 1
      %s244 = scalar_select %p241, %s242, %s243
      %p247 = pneg %p241
      %p248 = scmp.eq.s32.totalorder %s22, 1
      %p249 = por %p247, %p248
      %p250 = scmp.ne.s32.totalorder %s242, %s245
      %p251 = scmp.eq.s32.totalorder %s22, 0
      %p252 = por %p250, %p251
      %p253 = scmp.ne.s32.totalorder %s242, %s245
      %p254 = scmp.eq.s32.totalorder %s27, 1
      %p255 = por %p253, %p254
      %p256 = scmp.ne.s32.totalorder %s245, %s246
      %p257 = scmp.eq.s32.totalorder %s27, 0
      %p258 = por %p256, %p257
      %p259 = scmp.ne.s32.totalorder %s245, %s246
      %p260 = scmp.eq.s32.totalorder %s28, 1
      %p261 = por %p259, %p260
      %p263 = scmp.ne.s32.totalorder %s246, %s262
      %p264 = scmp.eq.s32.totalorder %s28, 0
      %p265 = por %p263, %p264
      %p266 = scmp.le.s32.totalorder 1, %s22
      %p267 = scmp.lt.s32.totalorder %s22, 3
      %p268 = pnand %p266, %p267
      %p269 = pneg %p268
      // Predicated region
      $region9: #{tpu_custom_call.1} parent=5 // pred_check
        _
      $region10: #{tpu_custom_call.1} parent=5 // pred_check_branch
        %271 = sbr.rel (%p268) target = $region12
      $region11: #{tpu_custom_call.1} parent=5 // pred_region
        %s272 = ssub.s32 %s22, 1
        // Predicated region
        $region13: #{tpu_custom_call.1} parent=11 // pred_check
          %p273 = pneg %p86
        $region14: #{tpu_custom_call.1} parent=11 // pred_check_branch
          %275 = sbr.rel (%p273) target = $region16
        $region15: #{tpu_custom_call.1} parent=11 // pred_region
          %s277 = ssub.s32 256, 256
          %278 = vsyncadd [#allocation8], %s277
          %s279 = smul.addr %s32, 64
          %s280 = scalar_lea.hbm %s1, %s279
          %s281 = sshll.u32 [#allocation7], 4
          %s282 = int_to_ptr.vmem [resolvable:$true] %s281
          %287 = dma.hbm_to_vmem [thread:$0]  %s280, 256, %s282, [#allocation8], 64, 64, 4
        $region16: #{tpu_custom_call.1} parent=11 // pred_fallthru
          _
        // Predicated region
        $region17: #{tpu_custom_call.1} parent=11 // pred_check
          %p288 = pneg %p112
        $region18: #{tpu_custom_call.1} parent=11 // pred_check_branch
          %290 = sbr.rel (%p288) target = $region20
        $region19: #{tpu_custom_call.1} parent=11 // pred_region
          %p291 = scmp.lt.s32.totalorder %s32, 0
          %s292 = scalar_select %p291, %s32, 0
          %s293 = scalar_lea.vmem %s2, %s292
        $region20: #{tpu_custom_call.1} parent=11 // pred_fallthru
          _
        // Predicated region
        $region21: #{tpu_custom_call.1} parent=11 // pred_check
          %p294 = pneg %p133
        $region22: #{tpu_custom_call.1} parent=11 // pred_check_branch
          %296 = sbr.rel (%p294) target = $region24
        $region23: #{tpu_custom_call.1} parent=11 // pred_region
          %s298 = ssub.s32 256, 256
          %299 = vsyncadd [#allocation8], %s298
          %s300 = sshll.u32 [#allocation9], 4
          %s301 = int_to_ptr.vmem [resolvable:$true] %s300
          %306 = dma.hbm_to_vmem [thread:$0]  %s3, 256, %s301, [#allocation8], 64, 64, 4
        $region24: #{tpu_custom_call.1} parent=11 // pred_fallthru
          _
        // Predicated region
        $region25: #{tpu_custom_call.1} parent=11 // pred_check
          %p307 = pneg %p154
        $region26: #{tpu_custom_call.1} parent=11 // pred_check_branch
          %309 = sbr.rel (%p307) target = $region28
        $region27: #{tpu_custom_call.1} parent=11 // pred_region
          _
        $region28: #{tpu_custom_call.1} parent=11 // pred_fallthru
          _
      $region12: #{tpu_custom_call.1} parent=5 // pred_fallthru
        _
      %p310 = scmp.lt.s32.totalorder %s22, 2
      // Predicated region
      $region29: #{tpu_custom_call.1} parent=5 // pred_check
        %p311 = pneg %p310
      $region30: #{tpu_custom_call.1} parent=5 // pred_check_branch
        %313 = sbr.rel (%p311) target = $region32
      $region31: #{tpu_custom_call.1} parent=5 // pred_region
        // Predicated region
        $region33: #{tpu_custom_call.1} parent=31 // pred_check
          %p314 = pneg %p54
        $region34: #{tpu_custom_call.1} parent=31 // pred_check_branch
          %316 = sbr.rel (%p314) target = $region36
        $region35: #{tpu_custom_call.1} parent=31 // pred_region
          %s317 = sand.u32 %s44, 1
          %s318 = scalar_lea.sflag [#allocation5], %s317
          %s319 = sand.u32 %s44, 1
          %s320 = smul.addr %s319, 4
          %s321 = scalar_lea.vmem [#allocation4], %s320
          %s323 = ssub.s32 64, 64
          %324 = vsyncadd %s318, %s323
          %s325 = smul.addr %s29, 64
          %s326 = scalar_lea.hbm %s0, %s325
          %s328 = sshll.u32 %s321, 4
          %s329 = int_to_ptr.vmem [resolvable:$true] %s328
          %331 = dma.hbm_to_vmem [thread:$0]  %s326, 64, %s329, %s318
        $region36: #{tpu_custom_call.1} parent=31 // pred_fallthru
          _
        // Predicated region
        $region37: #{tpu_custom_call.1} parent=31 // pred_check
          %p332 = pneg %p174
        $region38: #{tpu_custom_call.1} parent=31 // pred_check_branch
          %334 = sbr.rel (%p332) target = $region40
        $region39: #{tpu_custom_call.1} parent=31 // pred_region
          %p335 = scmp.lt.s32.totalorder %s29, 1
          %s336 = scalar_select %p335, %s29, 1
          %s337 = smul.addr %s336, 8
          %s338 = scalar_lea.vmem %s5, %s337
        $region40: #{tpu_custom_call.1} parent=31 // pred_fallthru
          _
      $region32: #{tpu_custom_call.1} parent=5 // pred_fallthru
        _
      %p339 = scmp.le.s32.totalorder 1, %s22
      %p340 = scmp.lt.s32.totalorder %s22, 3
      %p341 = pnand %p339, %p340
      %p342 = pneg %p341
      // Predicated region
      $region41: #{tpu_custom_call.1} parent=5 // pred_check
        _
      $region42: #{tpu_custom_call.1} parent=5 // pred_check_branch
        %344 = sbr.rel (%p341) target = $region44
      $region43: #{tpu_custom_call.1} parent=5 // pred_region
        %s345 = ssub.s32 %s22, 1
        %s346 = sand.u32 %s47, 1
        %s347 = scalar_lea.sflag [#allocation5], %s346
        %s348 = sand.u32 %s47, 1
        %s349 = smul.addr %s348, 4
        %s350 = scalar_lea.vmem [#allocation4], %s349
        // Predicated region
        $region45: #{tpu_custom_call.1} parent=43 // pred_check
          %p351 = pneg %p60
        $region46: #{tpu_custom_call.1} parent=43 // pred_check_branch
          %353 = sbr.rel (%p351) target = $region48
        $region47: #{tpu_custom_call.1} parent=43 // pred_region
          %354 = dma.done %s347, 64
        $region48: #{tpu_custom_call.1} parent=43 // pred_fallthru
          _
        // Predicated region
        $region49: #{tpu_custom_call.1} parent=43 // pred_check
          %p355 = pneg %p86
        $region50: #{tpu_custom_call.1} parent=43 // pred_check_branch
          %357 = sbr.rel (%p355) target = $region52
        $region51: #{tpu_custom_call.1} parent=43 // pred_region
          %358 = dma.done [#allocation8], 256
        $region52: #{tpu_custom_call.1} parent=43 // pred_fallthru
          _
        // Predicated region
        $region53: #{tpu_custom_call.1} parent=43 // pred_check
          %p359 = pneg %p133
        $region54: #{tpu_custom_call.1} parent=43 // pred_check_branch
          %361 = sbr.rel (%p359) target = $region56
        $region55: #{tpu_custom_call.1} parent=43 // pred_region
          %362 = dma.done [#allocation8], 256
        $region56: #{tpu_custom_call.1} parent=43 // pred_fallthru
          _
        %s363 = sand.u32 %s47, 1
        %s364 = scalar_lea.sflag [#allocation5], %s363
        %s365 = sand.u32 %s47, 1
        %s366 = smul.addr %s365, 4
        %s367 = scalar_lea.vmem [#allocation4], %s366
        %p368 = pneg %p60
        %p369 = pneg %p57
        %p370 = pneg %p86
        %p371 = pneg %p83
        %p372 = scmp.lt.s32.totalorder %s32, 0
        %s373 = scalar_select %p372, %s32, 0
        %s374 = scalar_lea.vmem %s2, %s373
        %p375 = pneg %p112
        %p376 = pneg %p109
        %p377 = pneg %p133
        %p378 = pneg %p130
        %p379 = pneg %p154
        %p380 = pneg %p151
        %p381 = scmp.lt.s32.totalorder %s31, 1
        %s382 = scalar_select %p381, %s31, 1
        %s383 = smul.addr %s382, 8
        %s384 = scalar_lea.vmem %s5, %s383
        %p385 = pneg %p180
        %p386 = pneg %p177
        %p387 = pneg %p206
        %p388 = pneg %p203
        %p389 = scmp.lt.s32.totalorder %s31, 1
        %s390 = scalar_select %p389, %s31, 1
        %s391 = smul.addr %s390, 8
        %s392 = scalar_lea.vmem %s6, %s391
        %p393 = pneg %p232
        %p394 = pneg %p229
        %p395 = scmp.lt.s32.totalorder %s31, 1
        %s396 = scalar_select %p395, %s31, 1
        %s397 = smul.addr %s396, 8
        %s398 = scalar_lea.vmem %s7, %s397
        %p399 = pneg %p258
        %p400 = pneg %p255
        %s401 = sand.u32 %s245, 1
        %s402 = scalar_lea.sflag [#allocation6], %s401
        %s403 = sand.u32 %s245, 1
        %s404 = smul.addr %s403, 4
        %s405 = scalar_lea.vmem [#allocation10], %s404
        %p406 = scmp.lt.s32.totalorder %s32, 0
        %s407 = scalar_select %p406, %s32, 0
        %s408 = scalar_lea.vmem %s2, %s407
        %p409 = scmp.lt.s32.totalorder %s31, 1
        %s410 = scalar_select %p409, %s31, 1
        %s411 = smul.addr %s410, 8
        %s412 = scalar_lea.vmem %s5, %s411
        %p413 = scmp.lt.s32.totalorder %s31, 1
        %s414 = scalar_select %p413, %s31, 1
        %s415 = smul.addr %s414, 8
        %s416 = scalar_lea.vmem %s6, %s415
        %p417 = scmp.lt.s32.totalorder %s31, 1
        %s418 = scalar_select %p417, %s31, 1
        %s419 = smul.addr %s418, 8
        %s420 = scalar_lea.vmem %s7, %s419
        %p422 = scmp.eq.s32.totalorder %s32, 0
        // Predicated region
        $region57: #{tpu_custom_call.1} parent=43 // pred_check
          %p423 = pneg %p422
        $region58: #{tpu_custom_call.1} parent=43 // pred_check_branch
          %425 = sbr.rel (%p423) target = $region60
        $region59: #{tpu_custom_call.1} parent=43 // pred_region
          %vm426 = vcmask 7168
          %427 = vst.msk [vmem:[#allocation2] sm:$0xff] %vm426, -inf
          %428 = vst.msk [vmem:[#allocation3] sm:$0xff] %vm426, 0.0
        $region60: #{tpu_custom_call.1} parent=43 // pred_fallthru
          _
        %v429 = vld [vmem:[%s350] sm:$0xf]
        %v430 = vld [vmem:[#allocation7] sm:$0xf]
        %v431 = vld [vmem:[#allocation7 + $0x4] sm:$0xf]
        %v432 = vld [vmem:[#allocation7 + $0x8] sm:$0xf]
        %v433 = vld [vmem:[#allocation7 + $0xc] sm:$0xf]
        %v434 = vld [vmem:[%s408] sm:$0x1]
        %v436 = vlaneseq
        %v437 = vshrl.u32 %v436, 7
        %v438 = vsub.s32 0, %v437
        %v439 = vrot.slane %v434, %v438
        %v445 = vunpack.c.l.b16 %v430
        %v446 = vunpack.c.l.b16 %v431
        %v447 = vunpack.c.l.b16 %v432
        %v448 = vunpack.c.l.b16 %v433
        %v449 = vpack.c.b16 %v446, %v445
        %v450 = vpack.c.b16 %v448, %v447
        %vm453 = vcmask 261120
        %v455 = vsel %vm453, %v429, 0
        %457 = vmatprep.subr.bf16.mxu0 0
        %458 = vmatpush1.bf16.msra.mxu0 %v449
        %459 = vmatprep.subr.bf16.mxu0 0
        %460 = vmatpush1.bf16.msra.mxu0 %v450
        %461 = vmatprep.subr.bf16.mxu0 0
        %462 = vmatpush1.bf16.msra.mxu0 0
        %463 = vmatprep.subr.bf16.mxu0 0
        %464 = vmatpush1.bf16.msra.mxu0 0
        %465 = vmatprep.subr.bf16.mxu0 0
        %466 = vmatpush1.bf16.msra.mxu0 0
        %467 = vmatprep.subr.bf16.mxu0 0
        %468 = vmatpush1.bf16.msra.mxu0 0
        %469 = vmatprep.subr.bf16.mxu0 0
        %470 = vmatpush1.bf16.msra.mxu0 0
        %471 = vmatprep.subr.bf16.mxu0 0
        %472 = vmatpush1.bf16.msra.mxu0 0
        %473 = vmatprep.subr.bf16.mxu0 0
        %474 = vmatpush1.bf16.msra.mxu0 0
        %475 = vmatprep.subr.bf16.mxu0 0
        %476 = vmatpush1.bf16.msra.mxu0 0
        %477 = vmatprep.subr.bf16.mxu0 0
        %478 = vmatpush1.bf16.msra.mxu0 0
        %479 = vmatprep.subr.bf16.mxu0 0
        %480 = vmatpush1.bf16.msra.mxu0 0
        %481 = vmatprep.subr.bf16.mxu0 0
        %482 = vmatpush1.bf16.msra.mxu0 0
        %483 = vmatprep.subr.bf16.mxu0 0
        %484 = vmatpush1.bf16.msra.mxu0 0
        %485 = vmatprep.subr.bf16.mxu0 0
        %486 = vmatpush1.bf16.msra.mxu0 0
        %487 = vmatprep.subr.bf16.mxu0 0
        %488 = vmatpush1.bf16.msra.mxu0 0
        %489 = vmatprep.mubr.bf16.mxu0 0
        %490 = vmatmul.mubr.bf16.gmra.mrb[0].mxu0 %v455
        %v491 = vpop.f32.mrb[0].mxu0
        %v492 = vadd.f32 %v439, %v491
        %v493 = vpop.f32.mrb[0].mxu0
        %v494 = vpop.f32.mrb[0].mxu0
        %v495 = vpop.f32.mrb[0].mxu0
        %496 = vdwg.mxu0
        %v497 = vld [vmem:[#allocation2] sm:$0xff]
        %498 = vmax.xlane.f32.xlu0 %v492
        %v499 = vpop.xlane.xlu0 %498
        %v500 = vmax.f32 %v497, %v499
        %v501 = vld [vmem:[#allocation3] sm:$0xff]
        %v502 = vsub.f32 %v497, %v500
        %v503 = vmul.f32 %v502, 1.442695
        %v504 = vpow.pop %v503
        %v505 = vmul.f32 %v501, %v504
        %507 = vset.pattern.permute.xlu0 0
        %508 = vperm.xlu0 %507, %v500
        %v509 = vpop.permute.xlu0 %508
        %v511 = vsub.f32 %v492, %v509
        %v512 = vmul.f32 %v511, 1.442695
        %v513 = vpow.pop %v512
        %514 = vadd.xlane.f32.xlu0 %v513
        %v515 = vpop.xlane.xlu0 %514
        %v516 = vadd.f32 %v505, %v515
        %vm517 = vcmask 7168
        %518 = vst.msk [vmem:[#allocation3] sm:$0xff] %vm517, %v516
        %519 = vst.msk [vmem:[#allocation2] sm:$0xff] %vm517, %v500
        // Predicated region
        $region61: #{tpu_custom_call.1} parent=43 // pred_check
          %p520 = pneg %p422
        $region62: #{tpu_custom_call.1} parent=43 // pred_check_branch
          %522 = sbr.rel (%p520) target = $region64
        $region63: #{tpu_custom_call.1} parent=43 // pred_region
          %v523 = vld [vmem:[#allocation9] sm:$0xf]
          %v524 = vld [vmem:[#allocation9 + $0x4] sm:$0xf]
          %v525 = vld [vmem:[#allocation9 + $0x8] sm:$0xf]
          %v526 = vld [vmem:[#allocation9 + $0xc] sm:$0xf]
          %v527 = vld [vmem:[%s4] sm:$0x1]
          %v529 = vlaneseq
          %v530 = vshrl.u32 %v529, 7
          %v531 = vsub.s32 0, %v530
          %v532 = vrot.slane %v527, %v531
          %v538 = vunpack.c.l.b16 %v523
          %v539 = vunpack.c.l.b16 %v524
          %v540 = vunpack.c.l.b16 %v525
          %v541 = vunpack.c.l.b16 %v526
          %v542 = vpack.c.b16 %v539, %v538
          %v543 = vpack.c.b16 %v541, %v540
          %546 = vmatprep.subr.bf16.mxu0 0
          %547 = vmatpush1.bf16.msra.mxu0 %v542
          %548 = vmatprep.subr.bf16.mxu0 0
          %549 = vmatpush1.bf16.msra.mxu0 %v543
          %550 = vmatprep.subr.bf16.mxu0 0
          %551 = vmatpush1.bf16.msra.mxu0 0
          %552 = vmatprep.subr.bf16.mxu0 0
          %553 = vmatpush1.bf16.msra.mxu0 0
          %554 = vmatprep.subr.bf16.mxu0 0
          %555 = vmatpush1.bf16.msra.mxu0 0
          %556 = vmatprep.subr.bf16.mxu0 0
          %557 = vmatpush1.bf16.msra.mxu0 0
          %558 = vmatprep.subr.bf16.mxu0 0
          %559 = vmatpush1.bf16.msra.mxu0 0
          %560 = vmatprep.subr.bf16.mxu0 0
          %561 = vmatpush1.bf16.msra.mxu0 0
          %562 = vmatprep.subr.bf16.mxu0 0
          %563 = vmatpush1.bf16.msra.mxu0 0
          %564 = vmatprep.subr.bf16.mxu0 0
          %565 = vmatpush1.bf16.msra.mxu0 0
          %566 = vmatprep.subr.bf16.mxu0 0
          %567 = vmatpush1.bf16.msra.mxu0 0
          %568 = vmatprep.subr.bf16.mxu0 0
          %569 = vmatpush1.bf16.msra.mxu0 0
          %570 = vmatprep.subr.bf16.mxu0 0
          %571 = vmatpush1.bf16.msra.mxu0 0
          %572 = vmatprep.subr.bf16.mxu0 0
          %573 = vmatpush1.bf16.msra.mxu0 0
          %574 = vmatprep.subr.bf16.mxu0 0
          %575 = vmatpush1.bf16.msra.mxu0 0
          %576 = vmatprep.subr.bf16.mxu0 0
          %577 = vmatpush1.bf16.msra.mxu0 0
          %578 = vmatprep.mubr.bf16.mxu0 0
          %579 = vmatmul.mubr.bf16.gmra.mrb[0].mxu0 %v455
          %v580 = vpop.f32.mrb[0].mxu0
          %v581 = vadd.f32 %v532, %v580
          %v582 = vpop.f32.mrb[0].mxu0
          %v583 = vpop.f32.mrb[0].mxu0
          %v584 = vpop.f32.mrb[0].mxu0
          %585 = vdwg.mxu0
          %v586 = vxor.u32 %v581, 2147483648
          %v587 = vmul.f32 %v586, 1.442695
          %v588 = vpow.pop %v587
          %v589 = vadd.f32 %v588, 1.0
          %v590 = vrcp.pop %v589
          %v591 = vmul.f32 1.0, %v590
          %v592 = vld [vmem:[#allocation3] sm:$0xff]
          %v593 = vrcp.pop %v592
          %v594 = vmul.f32 %v591, %v593
          %595 = vst.msk [vmem:[%s416] sm:$0xff] %vm517, %v594
          %v596 = vld [vmem:[#allocation2] sm:$0xff]
          %597 = vst.msk [vmem:[%s420] sm:$0xff] %vm517, %v596
          %v598 = vld [vmem:[%s412] sm:$0xff]
          %vm599 = vcmask 130048
          %v600 = vsel %vm599, %v598, -inf
          %601 = vmax.xlane.f32.xlu0 %v600
          %v602 = vpop.xlane.xlu0 %601
          %v603 = vsub.f32 %v598, %v602
          %v604 = vmul.f32 %v603, 1.442695
          %v605 = vpow.pop %v604
          %v606 = vsel %vm599, %v605, 0.0
          %607 = vadd.xlane.f32.xlu0 %v606
          %v608 = vpop.xlane.xlu0 %607
          %v609 = vrcp.pop %v608
          %v610 = vmul.f32 %v605, %v609
          %v611 = vsub.f32 1.0, %v591
          %613 = vset.pattern.permute.xlu0 0
          %614 = vperm.xlu0 %613, %v611
          %v615 = vpop.permute.xlu0 %614
          %v617 = vmul.f32 %v615, %v610
          %v618 = vpack.c.bf16 %v617, %v617
          %vm619 = vcmask 125952
          %620 = vst.msk [vmem:[%s405] sm:$0xf] %vm619, %v618
        $region64: #{tpu_custom_call.1} parent=43 // pred_fallthru
          _
        %p621 = scmp.lt.s32.totalorder %s31, 1
        %s622 = scalar_select %p621, %s31, 1
        %s623 = smul.addr %s622, 8
        %s624 = scalar_lea.vmem %s6, %s623
        %p625 = scmp.lt.s32.totalorder %s31, 1
        %s626 = scalar_select %p625, %s31, 1
        %s627 = smul.addr %s626, 8
        %s628 = scalar_lea.vmem %s7, %s627
        %s629 = sand.u32 %s245, 1
        %s630 = scalar_lea.sflag [#allocation6], %s629
        %s631 = sand.u32 %s245, 1
        %s632 = smul.addr %s631, 4
        %s633 = scalar_lea.vmem [#allocation10], %s632
        // Predicated region
        $region65: #{tpu_custom_call.1} parent=43 // pred_check
          %p634 = pneg %p203
        $region66: #{tpu_custom_call.1} parent=43 // pred_check_branch
          %636 = sbr.rel (%p634) target = $region68
        $region67: #{tpu_custom_call.1} parent=43 // pred_region
          _
        $region68: #{tpu_custom_call.1} parent=43 // pred_fallthru
          _
        // Predicated region
        $region69: #{tpu_custom_call.1} parent=43 // pred_check
          %p637 = pneg %p229
        $region70: #{tpu_custom_call.1} parent=43 // pred_check_branch
          %639 = sbr.rel (%p637) target = $region72
        $region71: #{tpu_custom_call.1} parent=43 // pred_region
          _
        $region72: #{tpu_custom_call.1} parent=43 // pred_fallthru
          _
        // Predicated region
        $region73: #{tpu_custom_call.1} parent=43 // pred_check
          %p640 = pneg %p255
        $region74: #{tpu_custom_call.1} parent=43 // pred_check_branch
          %642 = sbr.rel (%p640) target = $region76
        $region75: #{tpu_custom_call.1} parent=43 // pred_region
          %s644 = ssub.s32 64, 64
          %645 = vsyncadd %s630, %s644
          %s646 = smul.addr %s31, 64
          %s647 = scalar_lea.hbm %s8, %s646
          %s649 = sshll.u32 %s633, 4
          %s650 = int_to_ptr.vmem [resolvable:$true] %s649
          %652 = dma.vmem_to_hbm [thread:$0]  %s650, 64, %s647, %s630
        $region76: #{tpu_custom_call.1} parent=43 // pred_fallthru
          _
      $region44: #{tpu_custom_call.1} parent=5 // pred_fallthru
        _
      %p653 = scmp.le.s32.totalorder 2, %s22
      // Predicated region
      $region77: #{tpu_custom_call.1} parent=5 // pred_check
        %p654 = pneg %p653
      $region78: #{tpu_custom_call.1} parent=5 // pred_check_branch
        %656 = sbr.rel (%p654) target = $region80
      $region79: #{tpu_custom_call.1} parent=5 // pred_region
        %s657 = ssub.s32 %s22, 2
        // Predicated region
        $region81: #{tpu_custom_call.1} parent=79 // pred_check
          %p658 = pneg %p209
        $region82: #{tpu_custom_call.1} parent=79 // pred_check_branch
          %660 = sbr.rel (%p658) target = $region84
        $region83: #{tpu_custom_call.1} parent=79 // pred_region
          %p661 = scmp.lt.s32.totalorder %s33, 1
          %s662 = scalar_select %p661, %s33, 1
          %s663 = smul.addr %s662, 8
          %s664 = scalar_lea.vmem %s6, %s663
        $region84: #{tpu_custom_call.1} parent=79 // pred_fallthru
          _
        // Predicated region
        $region85: #{tpu_custom_call.1} parent=79 // pred_check
          %p665 = pneg %p235
        $region86: #{tpu_custom_call.1} parent=79 // pred_check_branch
          %667 = sbr.rel (%p665) target = $region88
        $region87: #{tpu_custom_call.1} parent=79 // pred_region
          %p668 = scmp.lt.s32.totalorder %s33, 1
          %s669 = scalar_select %p668, %s33, 1
          %s670 = smul.addr %s669, 8
          %s671 = scalar_lea.vmem %s7, %s670
        $region88: #{tpu_custom_call.1} parent=79 // pred_fallthru
          _
        // Predicated region
        $region89: #{tpu_custom_call.1} parent=79 // pred_check
          %p672 = pneg %p261
        $region90: #{tpu_custom_call.1} parent=79 // pred_check_branch
          %674 = sbr.rel (%p672) target = $region92
        $region91: #{tpu_custom_call.1} parent=79 // pred_region
          %s675 = sand.u32 %s246, 1
          %s676 = scalar_lea.sflag [#allocation6], %s675
          %s677 = sand.u32 %s246, 1
          %s678 = smul.addr %s677, 4
          %s679 = scalar_lea.vmem [#allocation10], %s678
          %680 = dma.done %s676, 64
        $region92: #{tpu_custom_call.1} parent=79 // pred_fallthru
          _
      $region80: #{tpu_custom_call.1} parent=5 // pred_fallthru
        _
    $region6: #{tpu_custom_call.1} parent=1 // loop_footer
      %s26 = sadd.s32 1, %s22
    $region7: #{tpu_custom_call.1} parent=1 // loop_footer_branch
      %21 = sbr.rel target = $region3
    $region8: #{tpu_custom_call.1} parent=1 // loop_exit
      _
    %681 = vsyncpa [#allocation5], 1
    %s682 = scalar_lea.sflag [#allocation5], 1
    %683 = vsyncpa %s682, 1
    %684 = vsyncpa [#allocation8], 1
    %685 = vsyncpa [#allocation6], 1
    %s686 = scalar_lea.sflag [#allocation6], 1
    %687 = vsyncpa %s686, 1

</llo_original>
